<compile_context>
chip_gen: v6e
topology: v6e:2x2x1
jax: 0.10.0
libtpu: 0.0.40
codegen_flags: <defaults>
</compile_context>

<pallas_src>
import jax
import jax.numpy as jnp
from jax.experimental import pallas as pl
from jax.experimental.pallas import tpu as pltpu

D = 7              # feature dim of each input vector
R = 3              # number of interaction units
DP = 128           # padded 2*d (lane axis)
RP = 8             # padded r (sublane axis)
A_LANE = DP - 2    # lane holding `a` inside the packed parameter buffer
B_LANE = DP - 1    # lane holding `b` inside the packed parameter buffer


def _hoi_kernel(wba_ref, x_ref, o_ref):
    # wba_ref: (RP, DP) packed params: W2 in sublanes 0..R-1 / lanes 0..2D-1,
    #          `a` at lane A_LANE, `b` at lane B_LANE (sublanes 0..R-1), 0 else.
    # x_ref  : (1, DP)  concat(u_C_1, u_T_1) in lanes 0..2D-1, zero elsewhere.
    # o_ref  : (1, 1)   scalar output.
    wba = wba_ref[...]                                    # (RP, DP)
    x = x_ref[...]                                        # (1, DP)
    # z_j = sum_k W[j,k] * x[k]; lanes >= 2D (incl. the a/b lanes) see x == 0,
    # so they contribute nothing.  VPU multiply + XLU lane reduction.
    z = jnp.sum(wba * x, axis=-1, keepdims=True)          # (RP, 1)
    b = wba[:, B_LANE:B_LANE + 1]                         # (RP, 1)
    a = wba[:, A_LANE:A_LANE + 1]                         # (RP, 1)
    h = jnp.tanh(z + b)                                   # (RP, 1)  EUP
    # Padded rows: z=0, b=0 -> tanh(0)=0 and a=0 -> exactly 0 contribution.
    o_ref[...] = jnp.sum(a * h, axis=0, keepdims=True)    # (1, 1)


_COST = pl.CostEstimate(
    flops=2 * RP * DP + 4 * RP,
    transcendentals=RP,
    bytes_accessed=(RP * DP + DP + 1) * 4,
)

_VMEM_SPEC = pl.BlockSpec(memory_space=pltpu.MemorySpace.VMEM)


@jax.jit
def _hoi_call(wba_pad, u_C_1, u_T_1):
    """Per-call hot path: only the activation row is padded here."""
    concat = jnp.concatenate([u_C_1, u_T_1], axis=-1).astype(jnp.float32)
    x_pad = jnp.zeros((1, DP), jnp.float32).at[0, : 2 * D].set(concat)
    out = pl.pallas_call(
        _hoi_kernel,
        out_shape=jax.ShapeDtypeStruct((1, 1), jnp.float32),
        in_specs=[_VMEM_SPEC, _VMEM_SPEC],
        out_specs=_VMEM_SPEC,
        cost_estimate=_COST,
    )(wba_pad, x_pad)
    return out[0, 0]


class HigherOrderInteraction:
    """JAX/Pallas analog of the PyTorch module; params are packed once."""

    def __init__(self, W2, b, a):
        wba = jnp.zeros((RP, DP), jnp.float32)
        wba = wba.at[:R, : 2 * D].set(W2.astype(jnp.float32))
        wba = wba.at[:R, A_LANE].set(a.astype(jnp.float32))
        wba = wba.at[:R, B_LANE].set(b.astype(jnp.float32))
        self.wba_pad = wba          # built once, reused by every forward call

    def __call__(self, u_C_1, u_T_1):
        return _hoi_call(self.wba_pad, u_C_1, u_T_1)


def _reference(u_C_1, u_T_1, W2, b, a):
    concat = jnp.concatenate([u_C_1, u_T_1], axis=-1)
    h = jnp.tanh(W2 @ concat + b)
    return jnp.dot(a, h)


if __name__ == "__main__":
    key = jax.random.PRNGKey(0)
    k_w, k_b, k_a, k_uc, k_ut = jax.random.split(key, 5)

    # Deterministic "randn"-style parameter init (matches nn.Parameter shapes).
    W2 = jax.random.normal(k_w, (R, 2 * D), jnp.float32)
    b = jax.random.normal(k_b, (R,), jnp.float32)
    a = jax.random.normal(k_a, (R,), jnp.float32)

    u_C_1 = jax.random.normal(k_uc, (D,), jnp.float32)
    u_T_1 = jax.random.normal(k_ut, (D,), jnp.float32)

    module = HigherOrderInteraction(W2, b, a)
    out = jax.block_until_ready(module(u_C_1, u_T_1))

    ref = _reference(u_C_1, u_T_1, W2, b, a)
    assert jnp.allclose(out, ref, atol=1e-5, rtol=1e-5), (out, ref)

    print("KERNEL_OK")
</pallas_src>

<mosaic_0001>
module attributes {stable_mosaic.version = 11 : i64} {
  func.func @_hoi_kernel(%arg0: memref<8x128xf32, #tpu.memory_space<vmem>>, %arg1: memref<1x128xf32, #tpu.memory_space<vmem>>, %arg2: memref<1x1xf32, #tpu.memory_space<vmem>>) attributes {dimension_semantics = [], scalar_prefetch = 0 : i64, scratch_operands = 0 : i64, tpu.core_type = #tpu.core_type<tc>} {
    %c0 = arith.constant 0 : index
    %c0_0 = arith.constant 0 : index
    %0 = vector.load %arg0[%c0, %c0_0] : memref<8x128xf32, #tpu.memory_space<vmem>>, vector<8x128xf32>
    %c0_1 = arith.constant 0 : index
    %c0_2 = arith.constant 0 : index
    %1 = vector.load %arg1[%c0_1, %c0_2] : memref<1x128xf32, #tpu.memory_space<vmem>>, vector<1x128xf32>
    %2 = vector.broadcast %1 : vector<1x128xf32> to vector<8x128xf32>
    %3 = arith.mulf %0, %2 : vector<8x128xf32>
    %cst = arith.constant dense<0.000000e+00> : vector<8xf32>
    %4 = vector.multi_reduction <add>, %3, %cst [1] : vector<8x128xf32> to vector<8xf32>
    %5 = vector.shape_cast %4 : vector<8xf32> to vector<8x1xf32>
    %6 = vector.extract_strided_slice %0 {offsets = [0, 127], sizes = [8, 1], strides = [1, 1]} : vector<8x128xf32> to vector<8x1xf32>
    %7 = vector.extract_strided_slice %0 {offsets = [0, 126], sizes = [8, 1], strides = [1, 1]} : vector<8x128xf32> to vector<8x1xf32>
    %8 = arith.addf %5, %6 : vector<8x1xf32>
    %9 = math.tanh %8 : vector<8x1xf32>
    %10 = arith.mulf %7, %9 : vector<8x1xf32>
    %cst_3 = arith.constant dense<0.000000e+00> : vector<1xf32>
    %11 = vector.multi_reduction <add>, %10, %cst_3 [0] : vector<8x1xf32> to vector<1xf32>
    %12 = vector.shape_cast %11 : vector<1xf32> to vector<1x1xf32>
    %c0_4 = arith.constant 0 : index
    %c0_5 = arith.constant 0 : index
    %13 = vector.load %arg2[%c0_4, %c0_5] : memref<1x1xf32, #tpu.memory_space<vmem>>, vector<1x1xf32>
    tpu.vector_store %arg2[%c0_4, %c0_5], %12 {strides = array<i32>} : memref<1x1xf32, #tpu.memory_space<vmem>>, vector<1x1xf32>,
    return
  }
}

</mosaic_0001>

<llo_original>
// kernel: _hoi_call.1
$region0: #{_hoi_call.1}
  #allocation0 [shape = 'u32[]', space=smem, size = 0x4, offset = 0x4, fixed_abs, tag = 'smem constant byte address 0x4 - core index']
  #allocation1 [shape = 'u32[144,128]{1,0:T(1,128)}', space=vmem, size = 0x12000, scoped, tag = 'internal scratch']
  %s0 = inlined_call_operand.vmem [shape: f32[8,128], index: 0, kind: input, shape index: {}]
  %s1 = inlined_call_operand.vmem [shape: f32[1,128], index: 1, kind: input, shape index: {}]
  %s2 = inlined_call_operand.hbm [shape: f32[1,1], index: 2, kind: output, shape index: {}]
  %s3 = sld [smem:[#allocation0]]
  $region18: #{_hoi_call.1} parent=0
    _
  %s5 = ssub.s32 1, %s3
  %s6 = scalar_select 0, %s5, %s3
  $region1: #{_hoi_call.1} parent=0
    #allocation2 [shape = 'u8[512]{0}', space=vmem, size = 0x400, scoped, tag = 'output window, operand 0, single buffered']
    #allocation3 [shape = 's32[1]{0}', space=sflag, size = 0x4, scoped, tag = 'scoped memory for _hoi_call.1']
    %7 = vsyncpa [#allocation3], 0
    // Predicated region
    $region2: #{_hoi_call.1} parent=1 // pred_check
      _
    $region3: #{_hoi_call.1} parent=1 // pred_check_branch
      %9 = sbr.rel (0) target = $region5
    $region4: #{_hoi_call.1} parent=1 // pred_region
      _
    $region5: #{_hoi_call.1} parent=1 // pred_fallthru
      _
    // Predicated region
    $region6: #{_hoi_call.1} parent=1 // pred_check
      _
    $region7: #{_hoi_call.1} parent=1 // pred_check_branch
      %11 = sbr.rel (0) target = $region9
    $region8: #{_hoi_call.1} parent=1 // pred_region
      _
    $region9: #{_hoi_call.1} parent=1 // pred_fallthru
      _
    %v12 = vld [vmem:[%s0] sm:$0xff]
    %v13 = vld [vmem:[%s1] sm:$0x1]
    %v15 = vlaneseq
    %v16 = vshrl.u32 %v15, 7
    %v17 = vsub.s32 0, %v16
    %v18 = vrot.slane %v13, %v17
    %v20 = vmul.f32 %v12, %v18
    %21 = vadd.xlane.f32.xlu0 %v20
    %v22 = vpop.xlane.xlu0 %21
    %v23 = vadd.f32 %v22, %v12
    %v24 = vtanh.pop %v23
    %26 = vrot.lane.b32.xlu0 %v24, 127
    %v27 = vpop.permute.xlu0 %26
    %v29 = vmul.f32 %v12, %v27
    %vm30 = vcmask 1040368
    %v31 = vsel %vm30, %v29, 0.0
    %v32 = vrot.slane %v31, 4
    %v33 = vadd.f32 %v31, %v32
    %v34 = vrot.slane %v33, 2
    %v35 = vadd.f32 %v33, %v34
    %v36 = vrot.slane %v35, 1
    %v37 = vadd.f32 %v35, %v36
    %39 = vrot.lane.b32.xlu0 %v37, 2
    %v40 = vpop.permute.xlu0 %39
    %vm42 = vcmask 0
    %43 = vst.msk [vmem:[#allocation2] sm:$0x1] %vm42, %v40
    // Predicated region
    $region10: #{_hoi_call.1} parent=1 // pred_check
      _
    $region11: #{_hoi_call.1} parent=1 // pred_check_branch
      %45 = sbr.rel (0) target = $region13
    $region12: #{_hoi_call.1} parent=1 // pred_region
      %s47 = ssub.s32 16, 16
      %48 = vsyncadd [#allocation3], %s47
      %s50 = sshll.u32 [#allocation2], 4
      %s51 = int_to_ptr.vmem [resolvable:$true] %s50
      %53 = dma.vmem_to_hbm [thread:$0]  %s51, 16, %s2, [#allocation3]
    $region13: #{_hoi_call.1} parent=1 // pred_fallthru
      _
    // Predicated region
    $region14: #{_hoi_call.1} parent=1 // pred_check
      _
    $region15: #{_hoi_call.1} parent=1 // pred_check_branch
      %55 = sbr.rel (0) target = $region17
    $region16: #{_hoi_call.1} parent=1 // pred_region
      %56 = dma.done [#allocation3], 16
    $region17: #{_hoi_call.1} parent=1 // pred_fallthru
      _
    %57 = vsyncpa [#allocation3], 1

</llo_original>
